<compile_context>
chip_gen: v6e
topology: v6e:2x2x1
jax: 0.10.0
libtpu: 0.0.40
codegen_flags: <defaults>
</compile_context>

<pallas_src>
import functools

import jax
import jax.numpy as jnp
from jax import lax
from jax.experimental import pallas as pl
from jax.experimental.pallas import tpu as pltpu


def _round_up(x, m):
    return ((x + m - 1) // m) * m


def _focal_values(logits_ref, targets_ref, wy_ref, gamma):
    """Per-sample focal loss for one (TN, C) tile. Returns (TN, 1) float32."""
    x = logits_ref[...].astype(jnp.float32)          # (TN, C)
    t = targets_ref[...]                             # (TN, 1) int32
    w_y = wy_ref[...]                                 # (TN, 1) f32 = alpha[target] (0 on padded rows)

    tn, c = x.shape

    # Numerically stable log-sum-exp over classes (lane axis).
    m = jnp.max(x, axis=-1, keepdims=True)                                   # (TN, 1)
    lse = m + jnp.log(jnp.sum(jnp.exp(x - m), axis=-1, keepdims=True))       # (TN, 1)

    # Gather target logit via masked max (no materialized float one-hot / multiply).
    class_ids = lax.broadcasted_iota(jnp.int32, (tn, c), 1)                  # (TN, C)
    x_y = jnp.max(jnp.where(class_ids == t, x, -jnp.inf),
                  axis=-1, keepdims=True)                                    # (TN, 1)

    # Weighted, unreduced cross-entropy.
    ce = w_y * (lse - x_y)                                                   # (TN, 1)

    pt = jnp.exp(-ce)
    one_minus_pt = jnp.maximum(1.0 - pt, 0.0)   # clamp: avoid NaN from tiny negative rounding

    g = float(gamma)
    if g == 2.0:
        mod = one_minus_pt * one_minus_pt               # 2 VPU muls, no EUP pow
    elif g.is_integer() and g >= 0.0:
        gi = int(g)
        mod = jnp.ones_like(one_minus_pt)
        for _ in range(gi):
            mod = mod * one_minus_pt
    else:
        mod = jnp.power(one_minus_pt, g)
    return mod * ce                                      # (TN, 1)


def _focal_mean_kernel(logits_ref, targets_ref, wy_ref, psum_ref, *, gamma):
    focal = _focal_values(logits_ref, targets_ref, wy_ref, gamma)   # (TN, 1)
    # Per-block partial sum; final mean is computed in the wrapper (keeps grid "parallel").
    psum_ref[...] = jnp.reshape(jnp.sum(focal), (1, 1, 1))


def _focal_none_kernel(logits_ref, targets_ref, wy_ref, per_ref, *, gamma):
    # TODO(synk): per-sample output stays as a (TN, 1) column (masked stores); a lane-dense
    # (1, TN) slab would need a sublane->lane relayout whose Mosaic lowering is not guaranteed.
    per_ref[...] = _focal_values(logits_ref, targets_ref, wy_ref, gamma)


def focal_loss(logits, targets, alpha=None, gamma=2.0, reduction="mean"):
    """Pallas TPU implementation of FocalLoss.forward.

    logits : (N, C) float array (f32 or bf16)
    targets: (N,)   int array of class indices in [0, C)
    alpha  : optional (C,) float array of per-class weights
    """
    n, c = logits.shape
    targets = jnp.asarray(targets, dtype=jnp.int32)

    # Precompute the per-sample class weight in the wrapper (cheap XLA gather);
    # removes one (TN, C) multiply + cross-lane reduce per tile in the kernel.
    if alpha is None:
        w_y = jnp.ones((n,), dtype=jnp.float32)
    else:
        w_y = jnp.asarray(alpha, dtype=jnp.float32)[targets]

    # --- tile sizing: target ~8 MiB per logits buffer (double-buffered ~16 MiB) ---
    itemsize = jnp.dtype(logits.dtype).itemsize
    row_bytes = max(c * itemsize, 1)
    tn = (8 * 1024 * 1024) // row_bytes
    tn = max(8, min(1024, tn))
    tn = (tn // 8) * 8                       # sublane-aligned
    tn = min(tn, _round_up(n, 8))            # don't over-pad tiny batches
    n_pad = _round_up(n, tn)
    num_blocks = n_pad // tn

    pad = n_pad - n
    if pad:
        logits_p = jnp.pad(logits, ((0, pad), (0, 0)))
        targets_p = jnp.pad(targets, (0, pad))            # padded target = class 0 (valid)
        wy_p = jnp.pad(w_y, (0, pad))                     # padded weight = 0 -> focal = 0
    else:
        logits_p, targets_p, wy_p = logits, targets, w_y

    targets2d = targets_p.reshape(n_pad, 1)
    wy2d = wy_p.reshape(n_pad, 1).astype(jnp.float32)

    in_specs = [
        pl.BlockSpec((tn, c), lambda i: (i, 0)),   # logits tile
        pl.BlockSpec((tn, 1), lambda i: (i, 0)),   # targets
        pl.BlockSpec((tn, 1), lambda i: (i, 0)),   # per-sample class weight
    ]
    cparams = pltpu.CompilerParams(dimension_semantics=("parallel",))

    if reduction == "mean":
        psums = pl.pallas_call(
            functools.partial(_focal_mean_kernel, gamma=float(gamma)),
            out_shape=jax.ShapeDtypeStruct((num_blocks, 1, 1), jnp.float32),
            grid=(num_blocks,),
            in_specs=in_specs,
            out_specs=pl.BlockSpec((1, 1, 1), lambda i: (i, 0, 0)),
            compiler_params=cparams,
        )(logits_p, targets2d, wy2d)
        # Padded rows contribute exactly 0; divide by the true N.
        return jnp.sum(psums) / n

    per = pl.pallas_call(
        functools.partial(_focal_none_kernel, gamma=float(gamma)),
        out_shape=jax.ShapeDtypeStruct((n_pad, 1), jnp.float32),
        grid=(num_blocks,),
        in_specs=in_specs,
        out_specs=pl.BlockSpec((tn, 1), lambda i: (i, 0)),
        compiler_params=cparams,
    )(logits_p, targets2d, wy2d)
    return per[:n, 0]


def _focal_loss_ref(logits, targets, alpha=None, gamma=2.0, reduction="mean"):
    # Pure-JAX reference mirroring torch semantics.
    x = logits.astype(jnp.float32)
    n, c = x.shape
    w = jnp.ones((c,), jnp.float32) if alpha is None else jnp.asarray(alpha, jnp.float32)
    lse = jax.scipy.special.logsumexp(x, axis=-1)
    x_y = jnp.take_along_axis(x, targets[:, None].astype(jnp.int32), axis=-1)[:, 0]
    ce = w[targets] * (lse - x_y)
    pt = jnp.exp(-ce)
    focal = (1.0 - pt) ** gamma * ce
    return jnp.mean(focal) if reduction == "mean" else focal


if __name__ == "__main__":
    key = jax.random.PRNGKey(0)
    k1, k2, k3, k4 = jax.random.split(key, 4)

    # Small example: batch=8, classes=16.
    N, C = 8, 16
    logits = jax.random.normal(k1, (N, C), dtype=jnp.float32)
    targets = jax.random.randint(k2, (N,), 0, C, dtype=jnp.int32)
    alpha = 0.5 + jnp.arange(C, dtype=jnp.float32) / C

    out_mean = focal_loss(logits, targets, alpha=alpha, gamma=2.0, reduction="mean")
    jax.block_until_ready(out_mean)
    out_none = focal_loss(logits, targets, alpha=None, gamma=2.0, reduction="none")
    jax.block_until_ready(out_none)

    ref_mean = _focal_loss_ref(logits, targets, alpha=alpha, gamma=2.0, reduction="mean")
    ref_none = _focal_loss_ref(logits, targets, alpha=None, gamma=2.0, reduction="none")
    assert jnp.allclose(out_mean, ref_mean, atol=1e-5, rtol=1e-5)
    assert jnp.allclose(out_none, ref_none, atol=1e-5, rtol=1e-5)

    # Non-multiple-of-8 batch -> exercises the zero-weight padding path.
    N2 = 12
    logits2 = jax.random.normal(k3, (N2, C), dtype=jnp.float32)
    targets2 = jax.random.randint(k4, (N2,), 0, C, dtype=jnp.int32)
    out_mean2 = focal_loss(logits2, targets2, alpha=alpha, gamma=2.0, reduction="mean")
    out_none2 = focal_loss(logits2, targets2, alpha=alpha, gamma=2.0, reduction="none")
    jax.block_until_ready((out_mean2, out_none2))
    ref_mean2 = _focal_loss_ref(logits2, targets2, alpha=alpha, gamma=2.0, reduction="mean")
    ref_none2 = _focal_loss_ref(logits2, targets2, alpha=alpha, gamma=2.0, reduction="none")
    assert jnp.allclose(out_mean2, ref_mean2, atol=1e-5, rtol=1e-5)
    assert jnp.allclose(out_none2, ref_none2, atol=1e-5, rtol=1e-5)

    print("KERNEL_OK")
</pallas_src>

<mosaic_0001>
module attributes {stable_mosaic.version = 11 : i64} {
  func.func @_focal_mean_kernel(%arg0: i32, %arg1: memref<8x16xf32, #tpu.memory_space<vmem>>, %arg2: memref<8x1xi32, #tpu.memory_space<vmem>>, %arg3: memref<8x1xf32, #tpu.memory_space<vmem>>, %arg4: memref<1x1x1xf32, #tpu.memory_space<vmem>>) attributes {dimension_semantics = [#tpu.dimension_semantics<parallel>], iteration_bounds = array<i64: 1>, scalar_prefetch = 0 : i64, scratch_operands = 0 : i64, tpu.core_type = #tpu.core_type<tc>, window_params = [{transform_indices = @transform_0, window_bounds = array<i64: 8, 16>}, {transform_indices = @transform_1, window_bounds = array<i64: 8, 1>}, {transform_indices = @transform_2, window_bounds = array<i64: 8, 1>}, {transform_indices = @transform_3, window_bounds = array<i64: 1, 1, 1>}]} {
    %c0 = arith.constant 0 : index
    %c0_0 = arith.constant 0 : index
    %0 = vector.load %arg1[%c0, %c0_0] : memref<8x16xf32, #tpu.memory_space<vmem>>, vector<8x16xf32>
    %c0_1 = arith.constant 0 : index
    %c0_2 = arith.constant 0 : index
    %1 = vector.load %arg2[%c0_1, %c0_2] : memref<8x1xi32, #tpu.memory_space<vmem>>, vector<8x1xi32>
    %c0_3 = arith.constant 0 : index
    %c0_4 = arith.constant 0 : index
    %2 = vector.load %arg3[%c0_3, %c0_4] : memref<8x1xf32, #tpu.memory_space<vmem>>, vector<8x1xf32>
    %cst = arith.constant dense<0xFF800000> : vector<8xf32>
    %3 = vector.multi_reduction <maximumf>, %0, %cst [1] : vector<8x16xf32> to vector<8xf32>
    %4 = vector.shape_cast %3 : vector<8xf32> to vector<8x1xf32>
    %5 = vector.broadcast %4 : vector<8x1xf32> to vector<8x16xf32>
    %6 = arith.subf %0, %5 : vector<8x16xf32>
    %7 = math.exp %6 : vector<8x16xf32>
    %cst_5 = arith.constant dense<0.000000e+00> : vector<8xf32>
    %8 = vector.multi_reduction <add>, %7, %cst_5 [1] : vector<8x16xf32> to vector<8xf32>
    %9 = vector.shape_cast %8 : vector<8xf32> to vector<8x1xf32>
    %10 = math.log %9 : vector<8x1xf32>
    %11 = arith.addf %4, %10 : vector<8x1xf32>
    %12 = tpu.iota {dimensions = array<i32: 1>} : vector<8x16xi32>
    %13 = vector.broadcast %1 : vector<8x1xi32> to vector<8x16xi32>
    %14 = arith.cmpi eq, %12, %13 : vector<8x16xi32>
    %cst_6 = arith.constant 0xFF800000 : f32
    %15 = vector.broadcast %cst_6 : f32 to vector<8x16xf32>
    %16 = arith.select %14, %0, %15 : vector<8x16xi1>, vector<8x16xf32>
    %cst_7 = arith.constant dense<0xFF800000> : vector<8xf32>
    %17 = vector.multi_reduction <maximumf>, %16, %cst_7 [1] : vector<8x16xf32> to vector<8xf32>
    %18 = vector.shape_cast %17 : vector<8xf32> to vector<8x1xf32>
    %19 = arith.subf %11, %18 : vector<8x1xf32>
    %20 = arith.mulf %2, %19 : vector<8x1xf32>
    %cst_8 = arith.constant 0.000000e+00 : f32
    %21 = vector.broadcast %cst_8 : f32 to vector<8x1xf32>
    %22 = arith.subf %21, %20 : vector<8x1xf32>
    %23 = math.exp %22 : vector<8x1xf32>
    %cst_9 = arith.constant 1.000000e+00 : f32
    %24 = vector.broadcast %cst_9 : f32 to vector<8x1xf32>
    %25 = arith.subf %24, %23 : vector<8x1xf32>
    %cst_10 = arith.constant 0.000000e+00 : f32
    %26 = vector.broadcast %cst_10 : f32 to vector<8x1xf32>
    %27 = arith.maximumf %25, %26 : vector<8x1xf32>
    %28 = arith.mulf %27, %27 : vector<8x1xf32>
    %29 = arith.mulf %28, %20 : vector<8x1xf32>
    %30 = vector.shape_cast %29 : vector<8x1xf32> to vector<1x8x1xf32>
    %cst_11 = arith.constant dense<0.000000e+00> : vector<1xf32>
    %31 = vector.multi_reduction <add>, %30, %cst_11 [1, 2] : vector<1x8x1xf32> to vector<1xf32>
    %32 = vector.shape_cast %31 : vector<1xf32> to vector<1x1x1xf32>
    %33 = vector.extract %32[0, 0, 0] : f32 from vector<1x1x1xf32>
    %34 = vector.broadcast %33 : f32 to vector<1x1x1xf32>
    %c0_12 = arith.constant 0 : index
    %c0_13 = arith.constant 0 : index
    %c0_14 = arith.constant 0 : index
    %35 = vector.load %arg4[%c0_12, %c0_13, %c0_14] : memref<1x1x1xf32, #tpu.memory_space<vmem>>, vector<1x1x1xf32>
    tpu.vector_store %arg4[%c0_12, %c0_13, %c0_14], %34 {strides = array<i32>} : memref<1x1x1xf32, #tpu.memory_space<vmem>>, vector<1x1x1xf32>,
    return
  }
  func.func @transform_0(%arg0: i32) -> (i32, i32) {
    %c0_i32 = arith.constant 0 : i32
    %c0_i32_0 = arith.constant 0 : i32
    return %arg0, %c0_i32 : i32, i32
  }
  func.func @transform_1(%arg0: i32) -> (i32, i32) {
    %c0_i32 = arith.constant 0 : i32
    %c0_i32_0 = arith.constant 0 : i32
    return %arg0, %c0_i32 : i32, i32
  }
  func.func @transform_2(%arg0: i32) -> (i32, i32) {
    %c0_i32 = arith.constant 0 : i32
    %c0_i32_0 = arith.constant 0 : i32
    return %arg0, %c0_i32 : i32, i32
  }
  func.func @transform_3(%arg0: i32) -> (i32, i32, i32) {
    %c0_i32 = arith.constant 0 : i32
    %c0_i32_0 = arith.constant 0 : i32
    %c0_i32_1 = arith.constant 0 : i32
    return %arg0, %c0_i32, %c0_i32_0 : i32, i32, i32
  }
}

</mosaic_0001>

<llo_original>
// kernel: tpu_custom_call.1
$region0: #{tpu_custom_call.1}
  #allocation0 [shape = 'u32[]', space=smem, size = 0x4, offset = 0x4, fixed_abs, tag = 'smem constant byte address 0x4 - core index']
  #allocation1 [shape = 'u32[144,128]{1,0:T(1,128)}', space=vmem, size = 0x12000, scoped, tag = 'internal scratch']
  %s0 = inlined_call_operand.vmem [shape: f32[8,16], index: 0, kind: input, shape index: {}]
  %s1 = inlined_call_operand.vmem [shape: s32[8,1], index: 1, kind: input, shape index: {}]
  %s2 = inlined_call_operand.vmem [shape: f32[8,1], index: 2, kind: input, shape index: {}]
  %s3 = inlined_call_operand.hbm [shape: f32[1,1,1], index: 3, kind: output, shape index: {}]
  %s4 = sld [smem:[#allocation0]]
  $region22: #{tpu_custom_call.1} parent=0
    _
  %s6 = ssub.s32 1, %s4
  %s7 = scalar_select 0, %s6, %s4
  $region1: #{tpu_custom_call.1} parent=0
    #allocation2 [shape = 'u8[512]{0}', space=vmem, size = 0x400, scoped, tag = 'output window, operand 0, single buffered']
    #allocation3 [shape = 's32[1]{0}', space=sflag, size = 0x4, scoped, tag = 'scoped memory for tpu_custom_call.1']
    %8 = vsyncpa [#allocation3], 0
    // Predicated region
    $region2: #{tpu_custom_call.1} parent=1 // pred_check
      _
    $region3: #{tpu_custom_call.1} parent=1 // pred_check_branch
      %10 = sbr.rel (0) target = $region5
    $region4: #{tpu_custom_call.1} parent=1 // pred_region
      _
    $region5: #{tpu_custom_call.1} parent=1 // pred_fallthru
      _
    // Predicated region
    $region6: #{tpu_custom_call.1} parent=1 // pred_check
      _
    $region7: #{tpu_custom_call.1} parent=1 // pred_check_branch
      %12 = sbr.rel (0) target = $region9
    $region8: #{tpu_custom_call.1} parent=1 // pred_region
      _
    $region9: #{tpu_custom_call.1} parent=1 // pred_fallthru
      _
    // Predicated region
    $region10: #{tpu_custom_call.1} parent=1 // pred_check
      _
    $region11: #{tpu_custom_call.1} parent=1 // pred_check_branch
      %14 = sbr.rel (0) target = $region13
    $region12: #{tpu_custom_call.1} parent=1 // pred_region
      _
    $region13: #{tpu_custom_call.1} parent=1 // pred_fallthru
      _
    %v15 = vld [vmem:[%s0] sm:$0xff]
    %v16 = vld [vmem:[%s1] sm:$0xff]
    %v17 = vld [vmem:[%s2] sm:$0xff]
    %vm18 = vcmask 130048
    %v19 = vsel %vm18, %v15, -inf
    %20 = vmax.xlane.f32.xlu0 %v19
    %v21 = vpop.xlane.xlu0 %20
    %v22 = vsub.f32 %v15, %v21
    %v23 = vmul.f32 %v22, 1.442695
    %v24 = vpow.pop %v23
    %v25 = vsel %vm18, %v24, 0.0
    %26 = vadd.xlane.f32.xlu0 %v25
    %v27 = vpop.xlane.xlu0 %26
    %v28 = vlog2.pop %v27
    %v29 = vmul.f32 %v28, 0.6931472
    %v30 = vadd.f32 %v21, %v29
    %v31 = vlaneseq
    %v32 = vand.u32 %v31, 127
    %33 = vset.pattern.permute.xlu0 0
    %34 = vperm.xlu0 %33, %v16
    %v35 = vpop.permute.xlu0 %34
    %vm36 = vcmp.eq.s32.totalorder %v32, %v35
    %v37 = vsel %vm36, %v15, -inf
    %v38 = vsel %vm18, %v37, -inf
    %39 = vmax.xlane.f32.xlu0 %v38
    %v40 = vpop.xlane.xlu0 %39
    %v41 = vsub.f32 %v30, %v40
    %v42 = vmul.f32 %v17, %v41
    %v43 = vsub.f32 0.0, %v42
    %v44 = vmul.f32 %v43, 1.442695
    %v45 = vpow.pop %v44
    %v46 = vsub.f32 1.0, %v45
    %v47 = vmax.f32 %v46, 0.0
    %v48 = vmul.f32 %v47, %v47
    %v49 = vmul.f32 %v48, %v42
    %vm50 = vcmask 7168
    %v51 = vsel %vm50, %v49, 0.0
    %52 = vadd.xlane.f32.xlu0 %v51
    %v53 = vpop.xlane.xlu0 %52
    %v54 = vrot.slane %v53, 4
    %v55 = vadd.f32 %v53, %v54
    %v56 = vrot.slane %v55, 2
    %v57 = vadd.f32 %v55, %v56
    %v58 = vrot.slane %v57, 1
    %v59 = vadd.f32 %v57, %v58
    %s60 = vtos %v59
    %v61 = vstv %s60
    %vm62 = vcmask 0
    %63 = vst.msk [vmem:[#allocation2] sm:$0x1] %vm62, %v61
    // Predicated region
    $region14: #{tpu_custom_call.1} parent=1 // pred_check
      _
    $region15: #{tpu_custom_call.1} parent=1 // pred_check_branch
      %65 = sbr.rel (0) target = $region17
    $region16: #{tpu_custom_call.1} parent=1 // pred_region
      %s67 = ssub.s32 16, 16
      %68 = vsyncadd [#allocation3], %s67
      %s70 = sshll.u32 [#allocation2], 4
      %s71 = int_to_ptr.vmem [resolvable:$true] %s70
      %73 = dma.vmem_to_hbm [thread:$0]  %s71, 16, %s3, [#allocation3]
    $region17: #{tpu_custom_call.1} parent=1 // pred_fallthru
      _
    // Predicated region
    $region18: #{tpu_custom_call.1} parent=1 // pred_check
      _
    $region19: #{tpu_custom_call.1} parent=1 // pred_check_branch
      %75 = sbr.rel (0) target = $region21
    $region20: #{tpu_custom_call.1} parent=1 // pred_region
      %76 = dma.done [#allocation3], 16
    $region21: #{tpu_custom_call.1} parent=1 // pred_fallthru
      _
    %77 = vsyncpa [#allocation3], 1

</llo_original>
